<compile_context>
chip_gen: v7x
topology: tpu7x:2x2x1
jax: 0.10.0
libtpu: 0.0.40
codegen_flags: <defaults>
</compile_context>

<pallas_src>
import math

import jax
import jax.numpy as jnp
import numpy as np
from jax.experimental import pallas as pl
from jax.experimental.pallas import tpu as pltpu

LANE = 128


def _round_up(x, m):
    return ((x + m - 1) // m) * m


def _pad_cast(x, shape, dtype):
    """Zero-pad x up to `shape` and cast; skip the copy when it's a no-op."""
    if tuple(x.shape) == tuple(shape) and x.dtype == jnp.dtype(dtype):
        return x
    if tuple(x.shape) == tuple(shape):
        return x.astype(dtype)
    out = jnp.zeros(shape, dtype)
    return out.at[tuple(slice(0, s) for s in x.shape)].set(x.astype(dtype))


# ----------------------------- kernels ---------------------------------------


def _fused_kernel(adj_ref, h_ref, w_ref, norm_ref, b_ref, out_ref):
    # Small-graph path: everything VMEM-resident, single invocation.
    # hw = (h @ W) * norm ; bf16 MXU operands, f32 accumulation.
    hw = jnp.dot(h_ref[...], w_ref[...], preferred_element_type=jnp.float32)
    hw = (hw * norm_ref[...]).astype(jnp.bfloat16)
    # i8 -> f32 -> bf16 (two-step cast lowers robustly on all generations).
    a = adj_ref[...].astype(jnp.float32).astype(jnp.bfloat16)
    agg = jnp.dot(a, hw, preferred_element_type=jnp.float32)
    out_ref[...] = agg * norm_ref[...] + b_ref[...]


def _project_kernel(h_ref, w_ref, norm_ref, hw_ref):
    # hw = (h @ W) * norm ; operands are already bf16 (cast once in wrapper).
    hw = jnp.dot(h_ref[...], w_ref[...], preferred_element_type=jnp.float32)
    hw_ref[...] = (hw * norm_ref[...]).astype(hw_ref.dtype)


def _make_aggregate_kernel(hw_resident):
    def kernel(adj_ref, hw_ref, norm_ref, b_ref, out_ref):
        k = pl.program_id(1)

        @pl.when(k == 0)
        def _():
            out_ref[...] = jnp.zeros_like(out_ref)

        if hw_resident:
            tk = adj_ref.shape[1]
            src = pl.multiple_of(k * tk, tk)
            hw_tile = hw_ref[pl.ds(src, tk), :]
        else:
            hw_tile = hw_ref[...]

        # int8 {0,1} adjacency tile -> bf16 on the VPU (hidden under the MXU),
        # bf16 x bf16 -> f32, accumulated straight into the resident out block.
        a = adj_ref[...].astype(jnp.float32).astype(jnp.bfloat16)
        out_ref[...] += jnp.dot(a, hw_tile, preferred_element_type=jnp.float32)

        @pl.when(k == pl.num_programs(1) - 1)
        def _():
            out_ref[...] = out_ref[...] * norm_ref[...] + b_ref[...]

    return kernel


# ----------------------------- wrapper ----------------------------------------


def gcn_layer(adj, norm, h, weight, bias, *, tm=256, tk=256, fused_max_nodes=2048):
    """out = ((A @ (h * norm)) * norm) @ W + b, via (A @ ((h@W)*norm))*norm + b."""
    N, in_dim = h.shape
    out_dim = weight.shape[1]
    if bias is None:
        bias = jnp.zeros((out_dim,), jnp.float32)

    d_p = _round_up(max(out_dim, LANE), LANE)            # lane-dense output width
    w_p = _pad_cast(weight, (in_dim, d_p), jnp.bfloat16)
    b_p = _pad_cast(bias.reshape(1, -1), (1, d_p), jnp.float32)
    norm2 = norm.reshape(N, 1)

    # ---- small-graph fused path: one kernel, everything VMEM-resident -------
    if N <= fused_max_nodes:
        n_p = _round_up(N, LANE)
        adj_p = _pad_cast(adj, (n_p, n_p), jnp.int8)
        h_p = _pad_cast(h, (n_p, in_dim), jnp.bfloat16)
        norm_p = _pad_cast(norm2, (n_p, 1), jnp.float32)
        out_p = pl.pallas_call(
            _fused_kernel,
            out_shape=jax.ShapeDtypeStruct((n_p, d_p), jnp.float32),
            in_specs=[pl.BlockSpec(memory_space=pltpu.MemorySpace.VMEM)] * 5,
            out_specs=pl.BlockSpec(memory_space=pltpu.MemorySpace.VMEM),
            compiler_params=pltpu.CompilerParams(vmem_limit_bytes=48 * 1024 * 1024),
        )(adj_p, h_p, w_p, norm_p, b_p)
        return out_p[:N, :out_dim]

    # ---- large-graph tiled path ----------------------------------------------
    step = (tm * tk) // math.gcd(tm, tk)                 # lcm(tm, tk): no dropped tails
    n_p = _round_up(N, step)
    assert n_p % tm == 0 and n_p % tk == 0

    adj_p = _pad_cast(adj, (n_p, n_p), jnp.int8)
    h_p = _pad_cast(h, (n_p, in_dim), jnp.bfloat16)
    norm_p = _pad_cast(norm2, (n_p, 1), jnp.float32)

    # 1) Projection + source-norm scaling, tiled over node rows.
    hw = pl.pallas_call(
        _project_kernel,
        out_shape=jax.ShapeDtypeStruct((n_p, d_p), jnp.bfloat16),
        grid=(n_p // tm,),
        in_specs=[
            pl.BlockSpec((tm, in_dim), lambda i: (i, 0)),
            pl.BlockSpec((in_dim, d_p), lambda i: (0, 0)),
            pl.BlockSpec((tm, 1), lambda i: (i, 0)),
        ],
        out_specs=pl.BlockSpec((tm, d_p), lambda i: (i, 0)),
        compiler_params=pltpu.CompilerParams(dimension_semantics=("parallel",)),
    )(h_p, w_p, norm_p)

    # 2) Dense SpMM aggregation + dest-norm scaling + bias.
    #    hw is kept fully VMEM-resident when it fits a v7x-safe budget so it is
    #    fetched once instead of once per row tile; otherwise it streams per k.
    hw_bytes = n_p * d_p * 2
    hw_resident = hw_bytes <= 20 * 1024 * 1024            # ~40 MiB w/ double buffer
    if hw_resident:
        hw_spec = pl.BlockSpec((n_p, d_p), lambda i, k: (0, 0))
    else:
        hw_spec = pl.BlockSpec((tk, d_p), lambda i, k: (k, 0))

    # TODO(synk): if profiling shows exposed DMA once hw is resident, add
    # pipeline_mode=pl.Buffered(3) on the adjacency BlockSpec; also exploit
    # adjacency sparsity (skip all-zero blocks via scalar-prefetched indices).
    out_p = pl.pallas_call(
        _make_aggregate_kernel(hw_resident),
        out_shape=jax.ShapeDtypeStruct((n_p, d_p), jnp.float32),
        grid_spec=pltpu.PrefetchScalarGridSpec(
            num_scalar_prefetch=0,
            grid=(n_p // tm, n_p // tk),
            in_specs=[
                pl.BlockSpec((tm, tk), lambda i, k: (i, k)),      # int8 adj tile
                hw_spec,                                          # bf16 hw
                pl.BlockSpec((tm, 1), lambda i, k: (i, 0)),       # dest norm
                pl.BlockSpec((1, d_p), lambda i, k: (0, 0)),      # bias
            ],
            out_specs=pl.BlockSpec((tm, d_p), lambda i, k: (i, 0)),
        ),
        compiler_params=pltpu.CompilerParams(
            dimension_semantics=("parallel", "arbitrary"),
            vmem_limit_bytes=48 * 1024 * 1024),
    )(adj_p, hw, norm_p, b_p)

    return out_p[:N, :out_dim]


def xavier_uniform(key, shape, dtype=jnp.float32):
    fan_in, fan_out = shape
    limit = float(np.sqrt(6.0 / (fan_in + fan_out)))
    return jax.random.uniform(key, shape, dtype=dtype, minval=-limit, maxval=limit)


if __name__ == "__main__":
    key = jax.random.PRNGKey(0)
    k_adj, k_h, k_w = jax.random.split(key, 3)

    N = 256        # number of graph nodes
    in_dim = 64
    out_dim = 32

    # Random adjacency (with self-loops), symmetric for a well-defined norm.
    a = (jax.random.uniform(k_adj, (N, N)) < 0.05).astype(jnp.float32)
    adj = jnp.clip(a + a.T + jnp.eye(N, dtype=jnp.float32), 0.0, 1.0)

    # DGL-style symmetric normalization factor: norm_i = deg_i ^ (-1/2)
    deg = jnp.sum(adj, axis=1, keepdims=True)
    norm = 1.0 / jnp.sqrt(jnp.maximum(deg, 1.0))

    # Node features and parameters (matching __init__ shapes / inits).
    h = jax.random.normal(k_h, (N, in_dim), dtype=jnp.float32)
    weight = xavier_uniform(k_w, (in_dim, out_dim))          # nn.init.xavier_uniform_
    bias = jnp.full((out_dim,), 0.001, dtype=jnp.float32)    # nn.init.constant_(bias, 0.001)

    # Pure-JAX f32 reference (tolerance loosened for the bf16 MXU path).
    ref = ((adj @ (h * norm)) * norm) @ weight + bias

    # Fused single-kernel path (default for small graphs).
    out_fused = jax.block_until_ready(gcn_layer(adj, norm, h, weight, bias))
    np.testing.assert_allclose(np.asarray(out_fused), np.asarray(ref),
                               rtol=2e-2, atol=2e-2)

    # Tiled two-kernel path (large-graph code path, forced here for coverage).
    out_tiled = jax.block_until_ready(
        gcn_layer(adj, norm, h, weight, bias, tm=128, tk=128, fused_max_nodes=0))
    np.testing.assert_allclose(np.asarray(out_tiled), np.asarray(ref),
                               rtol=2e-2, atol=2e-2)

    print("KERNEL_OK")
</pallas_src>

<mosaic_0001>
module attributes {stable_mosaic.version = 11 : i64} {
  func.func @_fused_kernel(%arg0: memref<256x256xi8, #tpu.memory_space<vmem>>, %arg1: memref<256x64xbf16, #tpu.memory_space<vmem>>, %arg2: memref<64x128xbf16, #tpu.memory_space<vmem>>, %arg3: memref<256x1xf32, #tpu.memory_space<vmem>>, %arg4: memref<1x128xf32, #tpu.memory_space<vmem>>, %arg5: memref<256x128xf32, #tpu.memory_space<vmem>>) attributes {dimension_semantics = [], scalar_prefetch = 0 : i64, scratch_operands = 0 : i64, tpu.core_type = #tpu.core_type<tc>} {
    %c0 = arith.constant 0 : index
    %c0_0 = arith.constant 0 : index
    %0 = vector.load %arg1[%c0, %c0_0] : memref<256x64xbf16, #tpu.memory_space<vmem>>, vector<256x64xbf16>
    %c0_1 = arith.constant 0 : index
    %c0_2 = arith.constant 0 : index
    %1 = vector.load %arg2[%c0_1, %c0_2] : memref<64x128xbf16, #tpu.memory_space<vmem>>, vector<64x128xbf16>
    %cst = arith.constant dense<0.000000e+00> : vector<256x128xf32>
    %2 = tpu.matmul %0, %1, %cst {dimension_numbers = #tpu.dot_dimension_numbers<[1], [0], [0], [1], [0, 0, 1, 1], [], []>} : vector<256x64xbf16>, vector<64x128xbf16>, vector<256x128xf32> -> vector<256x128xf32>
    %c0_3 = arith.constant 0 : index
    %c0_4 = arith.constant 0 : index
    %3 = vector.load %arg3[%c0_3, %c0_4] : memref<256x1xf32, #tpu.memory_space<vmem>>, vector<256x1xf32>
    %4 = vector.broadcast %3 : vector<256x1xf32> to vector<256x128xf32>
    %5 = arith.mulf %2, %4 : vector<256x128xf32>
    %6 = arith.truncf %5 : vector<256x128xf32> to vector<256x128xbf16>
    %c0_5 = arith.constant 0 : index
    %c0_6 = arith.constant 0 : index
    %7 = vector.load %arg0[%c0_5, %c0_6] : memref<256x256xi8, #tpu.memory_space<vmem>>, vector<256x256xi8>
    %8 = arith.sitofp %7 : vector<256x256xi8> to vector<256x256xf32>
    %9 = arith.truncf %8 : vector<256x256xf32> to vector<256x256xbf16>
    %cst_7 = arith.constant dense<0.000000e+00> : vector<256x128xf32>
    %10 = tpu.matmul %9, %6, %cst_7 {dimension_numbers = #tpu.dot_dimension_numbers<[1], [0], [0], [1], [0, 0, 1, 1], [], []>} : vector<256x256xbf16>, vector<256x128xbf16>, vector<256x128xf32> -> vector<256x128xf32>
    %c0_8 = arith.constant 0 : index
    %c0_9 = arith.constant 0 : index
    %11 = vector.load %arg3[%c0_8, %c0_9] : memref<256x1xf32, #tpu.memory_space<vmem>>, vector<256x1xf32>
    %12 = vector.broadcast %11 : vector<256x1xf32> to vector<256x128xf32>
    %13 = arith.mulf %10, %12 : vector<256x128xf32>
    %c0_10 = arith.constant 0 : index
    %c0_11 = arith.constant 0 : index
    %14 = vector.load %arg4[%c0_10, %c0_11] : memref<1x128xf32, #tpu.memory_space<vmem>>, vector<1x128xf32>
    %15 = vector.broadcast %14 : vector<1x128xf32> to vector<256x128xf32>
    %16 = arith.addf %13, %15 : vector<256x128xf32>
    %c0_12 = arith.constant 0 : index
    %c0_13 = arith.constant 0 : index
    %17 = vector.load %arg5[%c0_12, %c0_13] : memref<256x128xf32, #tpu.memory_space<vmem>>, vector<256x128xf32>
    tpu.vector_store %arg5[%c0_12, %c0_13], %16 {strides = array<i32>} : memref<256x128xf32, #tpu.memory_space<vmem>>, vector<256x128xf32>,
    return
  }
}

</mosaic_0001>

<llo_original>
// kernel: tpu_custom_call.1
$region0: #{tpu_custom_call.1}
  #allocation0 [shape = 'u32[]', space=smem, size = 0x4, offset = 0x4, fixed_abs, tag = 'smem constant byte address 0x4 - core index']
  #allocation1 [shape = 'u32[144,128]{1,0:T(1,128)}', space=vmem, size = 0x12000, scoped, tag = 'internal scratch']
  %s0 = inlined_call_operand.vmem [shape: s8[256,256], index: 0, kind: input, shape index: {}]
  %s1 = inlined_call_operand.vmem [shape: bf16[256,64], index: 1, kind: input, shape index: {}]
  %s2 = inlined_call_operand.vmem [shape: bf16[64,128], index: 2, kind: input, shape index: {}]
  %s3 = inlined_call_operand.vmem [shape: f32[256,1], index: 3, kind: input, shape index: {}]
  %s4 = inlined_call_operand.vmem [shape: f32[1,128], index: 4, kind: input, shape index: {}]
  %s5 = inlined_call_operand.hbm [shape: f32[256,128], index: 5, kind: output, shape index: {}]
  %s6 = sld [smem:[#allocation0]]
  $region30: #{tpu_custom_call.1} parent=0
    _
  %s8 = ssub.s32 1, %s6
  %s9 = scalar_select 0, %s8, %s6
  $region1: #{tpu_custom_call.1} parent=0
    #allocation2 [shape = 'u8[131072]{0}', space=vmem, size = 0x20000, scoped, tag = 'output window, operand 0, single buffered']
    #allocation3 [shape = 's32[1]{0}', space=sflag, size = 0x4, scoped, tag = 'scoped memory for tpu_custom_call.1']
    %10 = vsyncpa [#allocation3], 0
    // Predicated region
    $region2: #{tpu_custom_call.1} parent=1 // pred_check
      _
    $region3: #{tpu_custom_call.1} parent=1 // pred_check_branch
      %12 = sbr.rel (0) target = $region5
    $region4: #{tpu_custom_call.1} parent=1 // pred_region
      _
    $region5: #{tpu_custom_call.1} parent=1 // pred_fallthru
      _
    // Predicated region
    $region6: #{tpu_custom_call.1} parent=1 // pred_check
      _
    $region7: #{tpu_custom_call.1} parent=1 // pred_check_branch
      %14 = sbr.rel (0) target = $region9
    $region8: #{tpu_custom_call.1} parent=1 // pred_region
      _
    $region9: #{tpu_custom_call.1} parent=1 // pred_fallthru
      _
    // Predicated region
    $region10: #{tpu_custom_call.1} parent=1 // pred_check
      _
    $region11: #{tpu_custom_call.1} parent=1 // pred_check_branch
      %16 = sbr.rel (0) target = $region13
    $region12: #{tpu_custom_call.1} parent=1 // pred_region
      _
    $region13: #{tpu_custom_call.1} parent=1 // pred_fallthru
      _
    // Predicated region
    $region14: #{tpu_custom_call.1} parent=1 // pred_check
      _
    $region15: #{tpu_custom_call.1} parent=1 // pred_check_branch
      %18 = sbr.rel (0) target = $region17
    $region16: #{tpu_custom_call.1} parent=1 // pred_region
      _
    $region17: #{tpu_custom_call.1} parent=1 // pred_fallthru
      _
    // Predicated region
    $region18: #{tpu_custom_call.1} parent=1 // pred_check
      _
    $region19: #{tpu_custom_call.1} parent=1 // pred_check_branch
      %20 = sbr.rel (0) target = $region21
    $region20: #{tpu_custom_call.1} parent=1 // pred_region
      _
    $region21: #{tpu_custom_call.1} parent=1 // pred_fallthru
      _
    %v22 = vld [vmem:[%s1] sm:$0xf]
    %v23 = vld [vmem:[%s1 + $0x4] sm:$0xf]
    %v24 = vld [vmem:[%s1 + $0x8] sm:$0xf]
    %v25 = vld [vmem:[%s1 + $0xc] sm:$0xf]
    %v26 = vld [vmem:[%s1 + $0x10] sm:$0xf]
    %v27 = vld [vmem:[%s1 + $0x14] sm:$0xf]
    %v28 = vld [vmem:[%s1 + $0x18] sm:$0xf]
    %v29 = vld [vmem:[%s1 + $0x1c] sm:$0xf]
    %v30 = vld [vmem:[%s1 + $0x20] sm:$0xf]
    %v31 = vld [vmem:[%s1 + $0x24] sm:$0xf]
    %v32 = vld [vmem:[%s1 + $0x28] sm:$0xf]
    %v33 = vld [vmem:[%s1 + $0x2c] sm:$0xf]
    %v34 = vld [vmem:[%s1 + $0x30] sm:$0xf]
    %v35 = vld [vmem:[%s1 + $0x34] sm:$0xf]
    %v36 = vld [vmem:[%s1 + $0x38] sm:$0xf]
    %v37 = vld [vmem:[%s1 + $0x3c] sm:$0xf]
    %v38 = vld [vmem:[%s1 + $0x40] sm:$0xf]
    %v39 = vld [vmem:[%s1 + $0x44] sm:$0xf]
    %v40 = vld [vmem:[%s1 + $0x48] sm:$0xf]
    %v41 = vld [vmem:[%s1 + $0x4c] sm:$0xf]
    %v42 = vld [vmem:[%s1 + $0x50] sm:$0xf]
    %v43 = vld [vmem:[%s1 + $0x54] sm:$0xf]
    %v44 = vld [vmem:[%s1 + $0x58] sm:$0xf]
    %v45 = vld [vmem:[%s1 + $0x5c] sm:$0xf]
    %v46 = vld [vmem:[%s1 + $0x60] sm:$0xf]
    %v47 = vld [vmem:[%s1 + $0x64] sm:$0xf]
    %v48 = vld [vmem:[%s1 + $0x68] sm:$0xf]
    %v49 = vld [vmem:[%s1 + $0x6c] sm:$0xf]
    %v50 = vld [vmem:[%s1 + $0x70] sm:$0xf]
    %v51 = vld [vmem:[%s1 + $0x74] sm:$0xf]
    %v52 = vld [vmem:[%s1 + $0x78] sm:$0xf]
    %v53 = vld [vmem:[%s1 + $0x7c] sm:$0xf]
    %v54 = vld [vmem:[%s2] sm:$0xf]
    %v55 = vld [vmem:[%s2 + $0x4] sm:$0xf]
    %v56 = vld [vmem:[%s2 + $0x8] sm:$0xf]
    %v57 = vld [vmem:[%s2 + $0xc] sm:$0xf]
    %v58 = vld [vmem:[%s2 + $0x10] sm:$0xf]
    %v59 = vld [vmem:[%s2 + $0x14] sm:$0xf]
    %v60 = vld [vmem:[%s2 + $0x18] sm:$0xf]
    %v61 = vld [vmem:[%s2 + $0x1c] sm:$0xf]
    %v94 = vunpack.c.l.b16 %v22
    %v95 = vunpack.c.l.b16 %v23
    %v96 = vunpack.c.l.b16 %v24
    %v97 = vunpack.c.l.b16 %v25
    %v98 = vunpack.c.l.b16 %v26
    %v99 = vunpack.c.l.b16 %v27
    %v100 = vunpack.c.l.b16 %v28
    %v101 = vunpack.c.l.b16 %v29
    %v102 = vunpack.c.l.b16 %v30
    %v103 = vunpack.c.l.b16 %v31
    %v104 = vunpack.c.l.b16 %v32
    %v105 = vunpack.c.l.b16 %v33
    %v106 = vunpack.c.l.b16 %v34
    %v107 = vunpack.c.l.b16 %v35
    %v108 = vunpack.c.l.b16 %v36
    %v109 = vunpack.c.l.b16 %v37
    %v110 = vunpack.c.l.b16 %v38
    %v111 = vunpack.c.l.b16 %v39
    %v112 = vunpack.c.l.b16 %v40
    %v113 = vunpack.c.l.b16 %v41
    %v114 = vunpack.c.l.b16 %v42
    %v115 = vunpack.c.l.b16 %v43
    %v116 = vunpack.c.l.b16 %v44
    %v117 = vunpack.c.l.b16 %v45
    %v118 = vunpack.c.l.b16 %v46
    %v119 = vunpack.c.l.b16 %v47
    %v120 = vunpack.c.l.b16 %v48
    %v121 = vunpack.c.l.b16 %v49
    %v122 = vunpack.c.l.b16 %v50
    %v123 = vunpack.c.l.b16 %v51
    %v124 = vunpack.c.l.b16 %v52
    %v125 = vunpack.c.l.b16 %v53
    %v126 = vpack.c.b16 %v95, %v94
    %v127 = vpack.c.b16 %v97, %v96
    %v128 = vpack.c.b16 %v99, %v98
    %v129 = vpack.c.b16 %v101, %v100
    %v130 = vpack.c.b16 %v103, %v102
    %v131 = vpack.c.b16 %v105, %v104
    %v132 = vpack.c.b16 %v107, %v106
    %v133 = vpack.c.b16 %v109, %v108
    %v134 = vpack.c.b16 %v111, %v110
    %v135 = vpack.c.b16 %v113, %v112
    %v136 = vpack.c.b16 %v115, %v114
    %v137 = vpack.c.b16 %v117, %v116
    %v138 = vpack.c.b16 %v119, %v118
    %v139 = vpack.c.b16 %v121, %v120
    %v140 = vpack.c.b16 %v123, %v122
    %v141 = vpack.c.b16 %v125, %v124
    %v150 = vunpack.c.l.b16 %v54
    %v151 = vunpack.c.l.b16 %v55
    %v152 = vunpack.c.l.b16 %v56
    %v153 = vunpack.c.l.b16 %v57
    %v154 = vunpack.c.l.b16 %v58
    %v155 = vunpack.c.l.b16 %v59
    %v156 = vunpack.c.l.b16 %v60
    %v157 = vunpack.c.l.b16 %v61
    %v158 = vpack.c.b16 %v151, %v150
    %v159 = vpack.c.b16 %v153, %v152
    %v160 = vpack.c.b16 %v155, %v154
    %v161 = vpack.c.b16 %v157, %v156
    %vm166 = vcmask 523264
    %v168 = vsel %vm166, %v126, 0
    %v171 = vsel %vm166, %v127, 0
    %v174 = vsel %vm166, %v128, 0
    %v177 = vsel %vm166, %v129, 0
    %v180 = vsel %vm166, %v130, 0
    %v183 = vsel %vm166, %v131, 0
    %v186 = vsel %vm166, %v132, 0
    %v189 = vsel %vm166, %v133, 0
    %v192 = vsel %vm166, %v134, 0
    %v195 = vsel %vm166, %v135, 0
    %v198 = vsel %vm166, %v136, 0
    %v201 = vsel %vm166, %v137, 0
    %v204 = vsel %vm166, %v138, 0
    %v207 = vsel %vm166, %v139, 0
    %v210 = vsel %vm166, %v140, 0
    %v213 = vsel %vm166, %v141, 0
    %215 = vmatprep.subr.bf16.mxu0 0
    %216 = vmatpush1.bf16.msra.mxu0 %v158
    %217 = vmatprep.subr.bf16.mxu0 0
    %218 = vmatpush1.bf16.msra.mxu0 %v159
    %219 = vmatprep.subr.bf16.mxu0 0
    %220 = vmatpush1.bf16.msra.mxu0 %v160
    %221 = vmatprep.subr.bf16.mxu0 0
    %222 = vmatpush1.bf16.msra.mxu0 %v161
    %223 = vmatprep.subr.bf16.mxu0 0
    %224 = vmatpush1.bf16.msra.mxu0 0
    %225 = vmatprep.subr.bf16.mxu0 0
    %226 = vmatpush1.bf16.msra.mxu0 0
    %227 = vmatprep.subr.bf16.mxu0 0
    %228 = vmatpush1.bf16.msra.mxu0 0
    %229 = vmatprep.subr.bf16.mxu0 0
    %230 = vmatpush1.bf16.msra.mxu0 0
    %231 = vmatprep.subr.bf16.mxu0 0
    %232 = vmatpush1.bf16.msra.mxu0 0
    %233 = vmatprep.subr.bf16.mxu0 0
    %234 = vmatpush1.bf16.msra.mxu0 0
    %235 = vmatprep.subr.bf16.mxu0 0
    %236 = vmatpush1.bf16.msra.mxu0 0
    %237 = vmatprep.subr.bf16.mxu0 0
    %238 = vmatpush1.bf16.msra.mxu0 0
    %239 = vmatprep.subr.bf16.mxu0 0
    %240 = vmatpush1.bf16.msra.mxu0 0
    %241 = vmatprep.subr.bf16.mxu0 0
    %242 = vmatpush1.bf16.msra.mxu0 0
    %243 = vmatprep.subr.bf16.mxu0 0
    %244 = vmatpush1.bf16.msra.mxu0 0
    %245 = vmatprep.subr.bf16.mxu0 0
    %246 = vmatpush1.bf16.msra.mxu0 0
    %247 = vmatprep.mubr.bf16.mxu0 0
    %248 = vmatmul.mubr.bf16.gmra.mrb[0].mxu0 %v168
    %v249 = vpop.f32.mrb[0].mxu0
    %v250 = vadd.f32 0.0, %v249
    %v251 = vpop.f32.mrb[0].mxu0
    %v252 = vpop.f32.mrb[0].mxu0
    %v253 = vadd.f32 0.0, %v252
    %v254 = vpop.f32.mrb[0].mxu0
    %255 = vmatprep.mubr.bf16.mxu0 0
    %256 = vmatmul.mubr.bf16.gmra.mrb[0].mxu0 %v171
    %v257 = vpop.f32.mrb[0].mxu0
    %v258 = vadd.f32 0.0, %v257
    %v259 = vpop.f32.mrb[0].mxu0
    %v260 = vpop.f32.mrb[0].mxu0
    %v261 = vadd.f32 0.0, %v260
    %v262 = vpop.f32.mrb[0].mxu0
    %263 = vmatprep.mubr.bf16.mxu0 0
    %264 = vmatmul.mubr.bf16.gmra.mrb[0].mxu0 %v174
    %v265 = vpop.f32.mrb[0].mxu0
    %v266 = vadd.f32 0.0, %v265
    %v267 = vpop.f32.mrb[0].mxu0
    %v268 = vpop.f32.mrb[0].mxu0
    %v269 = vadd.f32 0.0, %v268
    %v270 = vpop.f32.mrb[0].mxu0
    %271 = vmatprep.mubr.bf16.mxu0 0
    %272 = vmatmul.mubr.bf16.gmra.mrb[0].mxu0 %v177
    %v273 = vpop.f32.mrb[0].mxu0
    %v274 = vadd.f32 0.0, %v273
    %v275 = vpop.f32.mrb[0].mxu0
    %v276 = vpop.f32.mrb[0].mxu0
    %v277 = vadd.f32 0.0, %v276
    %v278 = vpop.f32.mrb[0].mxu0
    %279 = vmatprep.mubr.bf16.mxu0 0
    %280 = vmatmul.mubr.bf16.gmra.mrb[0].mxu0 %v180
    %v281 = vpop.f32.mrb[0].mxu0
    %v282 = vadd.f32 0.0, %v281
    %v283 = vpop.f32.mrb[0].mxu0
    %v284 = vpop.f32.mrb[0].mxu0
    %v285 = vadd.f32 0.0, %v284
    %v286 = vpop.f32.mrb[0].mxu0
    %287 = vmatprep.mubr.bf16.mxu0 0
    %288 = vmatmul.mubr.bf16.gmra.mrb[0].mxu0 %v183
    %v289 = vpop.f32.mrb[0].mxu0
    %v290 = vadd.f32 0.0, %v289
    %v291 = vpop.f32.mrb[0].mxu0
    %v292 = vpop.f32.mrb[0].mxu0
    %v293 = vadd.f32 0.0, %v292
    %v294 = vpop.f32.mrb[0].mxu0
    %295 = vmatprep.mubr.bf16.mxu0 0
    %296 = vmatmul.mubr.bf16.gmra.mrb[0].mxu0 %v186
    %v297 = vpop.f32.mrb[0].mxu0
    %v298 = vadd.f32 0.0, %v297
    %v299 = vpop.f32.mrb[0].mxu0
    %v300 = vpop.f32.mrb[0].mxu0
    %v301 = vadd.f32 0.0, %v300
    %v302 = vpop.f32.mrb[0].mxu0
    %303 = vmatprep.mubr.bf16.mxu0 0
    %304 = vmatmul.mubr.bf16.gmra.mrb[0].mxu0 %v189
    %v305 = vpop.f32.mrb[0].mxu0
    %v306 = vadd.f32 0.0, %v305
    %v307 = vpop.f32.mrb[0].mxu0
    %v308 = vpop.f32.mrb[0].mxu0
    %v309 = vadd.f32 0.0, %v308
    %v310 = vpop.f32.mrb[0].mxu0
    %311 = vmatprep.mubr.bf16.mxu0 0
    %312 = vmatmul.mubr.bf16.gmra.mrb[0].mxu0 %v192
    %v313 = vpop.f32.mrb[0].mxu0
    %v314 = vadd.f32 0.0, %v313
    %v315 = vpop.f32.mrb[0].mxu0
    %v316 = vpop.f32.mrb[0].mxu0
    %v317 = vadd.f32 0.0, %v316
    %v318 = vpop.f32.mrb[0].mxu0
    %319 = vmatprep.mubr.bf16.mxu0 0
    %320 = vmatmul.mubr.bf16.gmra.mrb[0].mxu0 %v195
    %v321 = vpop.f32.mrb[0].mxu0
    %v322 = vadd.f32 0.0, %v321
    %v323 = vpop.f32.mrb[0].mxu0
    %v324 = vpop.f32.mrb[0].mxu0
    %v325 = vadd.f32 0.0, %v324
    %v326 = vpop.f32.mrb[0].mxu0
    %327 = vmatprep.mubr.bf16.mxu0 0
    %328 = vmatmul.mubr.bf16.gmra.mrb[0].mxu0 %v198
    %v329 = vpop.f32.mrb[0].mxu0
    %v330 = vadd.f32 0.0, %v329
    %v331 = vpop.f32.mrb[0].mxu0
    %v332 = vpop.f32.mrb[0].mxu0
    %v333 = vadd.f32 0.0, %v332
    %v334 = vpop.f32.mrb[0].mxu0
    %335 = vmatprep.mubr.bf16.mxu0 0
    %336 = vmatmul.mubr.bf16.gmra.mrb[0].mxu0 %v201
    %v337 = vpop.f32.mrb[0].mxu0
    %v338 = vadd.f32 0.0, %v337
    %v339 = vpop.f32.mrb[0].mxu0
    %v340 = vpop.f32.mrb[0].mxu0
    %v341 = vadd.f32 0.0, %v340
    %v342 = vpop.f32.mrb[0].mxu0
    %343 = vmatprep.mubr.bf16.mxu0 0
    %344 = vmatmul.mubr.bf16.gmra.mrb[0].mxu0 %v204
    %v345 = vpop.f32.mrb[0].mxu0
    %v346 = vadd.f32 0.0, %v345
    %v347 = vpop.f32.mrb[0].mxu0
    %v348 = vpop.f32.mrb[0].mxu0
    %v349 = vadd.f32 0.0, %v348
    %v350 = vpop.f32.mrb[0].mxu0
    %351 = vmatprep.mubr.bf16.mxu0 0
    %352 = vmatmul.mubr.bf16.gmra.mrb[0].mxu0 %v207
    %v353 = vpop.f32.mrb[0].mxu0
    %v354 = vadd.f32 0.0, %v353
    %v355 = vpop.f32.mrb[0].mxu0
    %v356 = vpop.f32.mrb[0].mxu0
    %v357 = vadd.f32 0.0, %v356
    %v358 = vpop.f32.mrb[0].mxu0
    %359 = vmatprep.mubr.bf16.mxu0 0
    %360 = vmatmul.mubr.bf16.gmra.mrb[0].mxu0 %v210
    %v361 = vpop.f32.mrb[0].mxu0
    %v362 = vadd.f32 0.0, %v361
    %v363 = vpop.f32.mrb[0].mxu0
    %v364 = vpop.f32.mrb[0].mxu0
    %v365 = vadd.f32 0.0, %v364
    %v366 = vpop.f32.mrb[0].mxu0
    %367 = vmatprep.mubr.bf16.mxu0 0
    %368 = vmatmul.mubr.bf16.gmra.mrb[0].mxu0 %v213
    %v369 = vpop.f32.mrb[0].mxu0
    %v370 = vadd.f32 0.0, %v369
    %v371 = vpop.f32.mrb[0].mxu0
    %v372 = vpop.f32.mrb[0].mxu0
    %v373 = vadd.f32 0.0, %v372
    %v374 = vpop.f32.mrb[0].mxu0
    %375 = vdwg.mxu0
    %v376 = vld [vmem:[%s3] sm:$0xff]
    %v377 = vld [vmem:[%s3 + $0x8] sm:$0xff]
    %v378 = vld [vmem:[%s3 + $0x10] sm:$0xff]
    %v379 = vld [vmem:[%s3 + $0x18] sm:$0xff]
    %v380 = vld [vmem:[%s3 + $0x20] sm:$0xff]
    %v381 = vld [vmem:[%s3 + $0x28] sm:$0xff]
    %v382 = vld [vmem:[%s3 + $0x30] sm:$0xff]
    %v383 = vld [vmem:[%s3 + $0x38] sm:$0xff]
    %v384 = vld [vmem:[%s3 + $0x40] sm:$0xff]
    %v385 = vld [vmem:[%s3 + $0x48] sm:$0xff]
    %v386 = vld [vmem:[%s3 + $0x50] sm:$0xff]
    %v387 = vld [vmem:[%s3 + $0x58] sm:$0xff]
    %v388 = vld [vmem:[%s3 + $0x60] sm:$0xff]
    %v389 = vld [vmem:[%s3 + $0x68] sm:$0xff]
    %v390 = vld [vmem:[%s3 + $0x70] sm:$0xff]
    %v391 = vld [vmem:[%s3 + $0x78] sm:$0xff]
    %v392 = vld [vmem:[%s3 + $0x80] sm:$0xff]
    %v393 = vld [vmem:[%s3 + $0x88] sm:$0xff]
    %v394 = vld [vmem:[%s3 + $0x90] sm:$0xff]
    %v395 = vld [vmem:[%s3 + $0x98] sm:$0xff]
    %v396 = vld [vmem:[%s3 + $0xa0] sm:$0xff]
    %v397 = vld [vmem:[%s3 + $0xa8] sm:$0xff]
    %v398 = vld [vmem:[%s3 + $0xb0] sm:$0xff]
    %v399 = vld [vmem:[%s3 + $0xb8] sm:$0xff]
    %v400 = vld [vmem:[%s3 + $0xc0] sm:$0xff]
    %v401 = vld [vmem:[%s3 + $0xc8] sm:$0xff]
    %v402 = vld [vmem:[%s3 + $0xd0] sm:$0xff]
    %v403 = vld [vmem:[%s3 + $0xd8] sm:$0xff]
    %v404 = vld [vmem:[%s3 + $0xe0] sm:$0xff]
    %v405 = vld [vmem:[%s3 + $0xe8] sm:$0xff]
    %v406 = vld [vmem:[%s3 + $0xf0] sm:$0xff]
    %v407 = vld [vmem:[%s3 + $0xf8] sm:$0xff]
    %409 = vset.pattern.permute.xlu0 0
    %410 = vperm.xlu0 %409, %v376
    %v411 = vpop.permute.xlu0 %410
    %414 = vset.pattern.permute.xlu0 0
    %415 = vperm.xlu0 %414, %v377
    %v416 = vpop.permute.xlu0 %415
    %419 = vset.pattern.permute.xlu0 0
    %420 = vperm.xlu0 %419, %v378
    %v421 = vpop.permute.xlu0 %420
    %424 = vset.pattern.permute.xlu0 0
    %425 = vperm.xlu0 %424, %v379
    %v426 = vpop.permute.xlu0 %425
    %429 = vset.pattern.permute.xlu0 0
    %430 = vperm.xlu0 %429, %v380
    %v431 = vpop.permute.xlu0 %430
    %434 = vset.pattern.permute.xlu0 0
    %435 = vperm.xlu0 %434, %v381
    %v436 = vpop.permute.xlu0 %435
    %439 = vset.pattern.permute.xlu0 0
    %440 = vperm.xlu0 %439, %v382
    %v441 = vpop.permute.xlu0 %440
    %444 = vset.pattern.permute.xlu0 0
    %445 = vperm.xlu0 %444, %v383
    %v446 = vpop.permute.xlu0 %445
    %449 = vset.pattern.permute.xlu0 0
    %450 = vperm.xlu0 %449, %v384
    %v451 = vpop.permute.xlu0 %450
    %454 = vset.pattern.permute.xlu0 0
    %455 = vperm.xlu0 %454, %v385
    %v456 = vpop.permute.xlu0 %455
    %459 = vset.pattern.permute.xlu0 0
    %460 = vperm.xlu0 %459, %v386
    %v461 = vpop.permute.xlu0 %460
    %464 = vset.pattern.permute.xlu0 0
    %465 = vperm.xlu0 %464, %v387
    %v466 = vpop.permute.xlu0 %465
    %469 = vset.pattern.permute.xlu0 0
    %470 = vperm.xlu0 %469, %v388
    %v471 = vpop.permute.xlu0 %470
    %474 = vset.pattern.permute.xlu0 0
    %475 = vperm.xlu0 %474, %v389
    %v476 = vpop.permute.xlu0 %475
    %479 = vset.pattern.permute.xlu0 0
    %480 = vperm.xlu0 %479, %v390
    %v481 = vpop.permute.xlu0 %480
    %484 = vset.pattern.permute.xlu0 0
    %485 = vperm.xlu0 %484, %v391
    %v486 = vpop.permute.xlu0 %485
    %489 = vset.pattern.permute.xlu0 0
    %490 = vperm.xlu0 %489, %v392
    %v491 = vpop.permute.xlu0 %490
    %494 = vset.pattern.permute.xlu0 0
    %495 = vperm.xlu0 %494, %v393
    %v496 = vpop.permute.xlu0 %495
    %499 = vset.pattern.permute.xlu0 0
    %500 = vperm.xlu0 %499, %v394
    %v501 = vpop.permute.xlu0 %500
    %504 = vset.pattern.permute.xlu0 0
    %505 = vperm.xlu0 %504, %v395
    %v506 = vpop.permute.xlu0 %505
    %509 = vset.pattern.permute.xlu0 0
    %510 = vperm.xlu0 %509, %v396
    %v511 = vpop.permute.xlu0 %510
    %514 = vset.pattern.permute.xlu0 0
    %515 = vperm.xlu0 %514, %v397
    %v516 = vpop.permute.xlu0 %515
    %519 = vset.pattern.permute.xlu0 0
    %520 = vperm.xlu0 %519, %v398
    %v521 = vpop.permute.xlu0 %520
    %524 = vset.pattern.permute.xlu0 0
    %525 = vperm.xlu0 %524, %v399
    %v526 = vpop.permute.xlu0 %525
    %529 = vset.pattern.permute.xlu0 0
    %530 = vperm.xlu0 %529, %v400
    %v531 = vpop.permute.xlu0 %530
    %534 = vset.pattern.permute.xlu0 0
    %535 = vperm.xlu0 %534, %v401
    %v536 = vpop.permute.xlu0 %535
    %539 = vset.pattern.permute.xlu0 0
    %540 = vperm.xlu0 %539, %v402
    %v541 = vpop.permute.xlu0 %540
    %544 = vset.pattern.permute.xlu0 0
    %545 = vperm.xlu0 %544, %v403
    %v546 = vpop.permute.xlu0 %545
    %549 = vset.pattern.permute.xlu0 0
    %550 = vperm.xlu0 %549, %v404
    %v551 = vpop.permute.xlu0 %550
    %554 = vset.pattern.permute.xlu0 0
    %555 = vperm.xlu0 %554, %v405
    %v556 = vpop.permute.xlu0 %555
    %559 = vset.pattern.permute.xlu0 0
    %560 = vperm.xlu0 %559, %v406
    %v561 = vpop.permute.xlu0 %560
    %564 = vset.pattern.permute.xlu0 0
    %565 = vperm.xlu0 %564, %v407
    %v566 = vpop.permute.xlu0 %565
    %v568 = vmul.f32 %v250, %v411
    %v569 = vmul.f32 %v253, %v416
    %v570 = vmul.f32 %v258, %v421
    %v571 = vmul.f32 %v261, %v426
    %v572 = vmul.f32 %v266, %v431
    %v573 = vmul.f32 %v269, %v436
    %v574 = vmul.f32 %v274, %v441
    %v575 = vmul.f32 %v277, %v446
    %v576 = vmul.f32 %v282, %v451
    %v577 = vmul.f32 %v285, %v456
    %v578 = vmul.f32 %v290, %v461
    %v579 = vmul.f32 %v293, %v466
    %v580 = vmul.f32 %v298, %v471
    %v581 = vmul.f32 %v301, %v476
    %v582 = vmul.f32 %v306, %v481
    %v583 = vmul.f32 %v309, %v486
    %v584 = vmul.f32 %v314, %v491
    %v585 = vmul.f32 %v317, %v496
    %v586 = vmul.f32 %v322, %v501
    %v587 = vmul.f32 %v325, %v506
    %v588 = vmul.f32 %v330, %v511
    %v589 = vmul.f32 %v333, %v516
    %v590 = vmul.f32 %v338, %v521
    %v591 = vmul.f32 %v341, %v526
    %v592 = vmul.f32 %v346, %v531
    %v593 = vmul.f32 %v349, %v536
    %v594 = vmul.f32 %v354, %v541
    %v595 = vmul.f32 %v357, %v546
    %v596 = vmul.f32 %v362, %v551
    %v597 = vmul.f32 %v365, %v556
    %v598 = vmul.f32 %v370, %v561
    %v599 = vmul.f32 %v373, %v566
    %v600 = vpack.c.bf16 %v569, %v568
    %v601 = vpack.c.bf16 %v571, %v570
    %v602 = vpack.c.bf16 %v573, %v572
    %v603 = vpack.c.bf16 %v575, %v574
    %v604 = vpack.c.bf16 %v577, %v576
    %v605 = vpack.c.bf16 %v579, %v578
    %v606 = vpack.c.bf16 %v581, %v580
    %v607 = vpack.c.bf16 %v583, %v582
    %v608 = vpack.c.bf16 %v585, %v584
    %v609 = vpack.c.bf16 %v587, %v586
    %v610 = vpack.c.bf16 %v589, %v588
    %v611 = vpack.c.bf16 %v591, %v590
    %v612 = vpack.c.bf16 %v593, %v592
    %v613 = vpack.c.bf16 %v595, %v594
    %v614 = vpack.c.bf16 %v597, %v596
    %v615 = vpack.c.bf16 %v599, %v598
    %v616 = vld [vmem:[%s0] sm:$0xff]
    %v617 = vld [vmem:[%s0 + $0x8] sm:$0xff]
    %v618 = vld [vmem:[%s0 + $0x10] sm:$0xff]
    %v619 = vld [vmem:[%s0 + $0x18] sm:$0xff]
    %v620 = vld [vmem:[%s0 + $0x20] sm:$0xff]
    %v621 = vld [vmem:[%s0 + $0x28] sm:$0xff]
    %v622 = vld [vmem:[%s0 + $0x30] sm:$0xff]
    %v623 = vld [vmem:[%s0 + $0x38] sm:$0xff]
    %v624 = vld [vmem:[%s0 + $0x40] sm:$0xff]
    %v625 = vld [vmem:[%s0 + $0x48] sm:$0xff]
    %v626 = vld [vmem:[%s0 + $0x50] sm:$0xff]
    %v627 = vld [vmem:[%s0 + $0x58] sm:$0xff]
    %v628 = vld [vmem:[%s0 + $0x60] sm:$0xff]
    %v629 = vld [vmem:[%s0 + $0x68] sm:$0xff]
    %v630 = vld [vmem:[%s0 + $0x70] sm:$0xff]
    %v631 = vld [vmem:[%s0 + $0x78] sm:$0xff]
    %v632 = vunpack.c.l.s8.bf16 %v616
    %v633 = vunpack.c.l.s8.bf16 %v617
    %v634 = vunpack.c.h.s8.bf16 %v616
    %v635 = vunpack.c.h.s8.bf16 %v617
    %v636 = vunpack.c.l.s8.bf16 %v618
    %v637 = vunpack.c.l.s8.bf16 %v619
    %v638 = vunpack.c.h.s8.bf16 %v618
    %v639 = vunpack.c.h.s8.bf16 %v619
    %v640 = vunpack.c.l.s8.bf16 %v620
    %v641 = vunpack.c.l.s8.bf16 %v621
    %v642 = vunpack.c.h.s8.bf16 %v620
    %v643 = vunpack.c.h.s8.bf16 %v621
    %v644 = vunpack.c.l.s8.bf16 %v622
    %v645 = vunpack.c.l.s8.bf16 %v623
    %v646 = vunpack.c.h.s8.bf16 %v622
    %v647 = vunpack.c.h.s8.bf16 %v623
    %v648 = vunpack.c.l.s8.bf16 %v624
    %v649 = vunpack.c.l.s8.bf16 %v625
    %v650 = vunpack.c.h.s8.bf16 %v624
    %v651 = vunpack.c.h.s8.bf16 %v625
    %v652 = vunpack.c.l.s8.bf16 %v626
    %v653 = vunpack.c.l.s8.bf16 %v627
    %v654 = vunpack.c.h.s8.bf16 %v626
    %v655 = vunpack.c.h.s8.bf16 %v627
    %v656 = vunpack.c.l.s8.bf16 %v628
    %v657 = vunpack.c.l.s8.bf16 %v629
    %v658 = vunpack.c.h.s8.bf16 %v628
    %v659 = vunpack.c.h.s8.bf16 %v629
    %v660 = vunpack.c.l.s8.bf16 %v630
    %v661 = vunpack.c.l.s8.bf16 %v631
    %v662 = vunpack.c.h.s8.bf16 %v630
    %v663 = vunpack.c.h.s8.bf16 %v631
    %664 = vmatprep.subr.bf16.mxu0 0
    %665 = vmatpush1.bf16.msra.mxu0 %v600
    %666 = vmatprep.subr.bf16.mxu0 0
    %667 = vmatpush1.bf16.msra.mxu0 %v601
    %668 = vmatprep.subr.bf16.mxu0 0
    %669 = vmatpush1.bf16.msra.mxu0 %v602
    %670 = vmatprep.subr.bf16.mxu0 0
    %671 = vmatpush1.bf16.msra.mxu0 %v603
    %672 = vmatprep.subr.bf16.mxu0 0
    %673 = vmatpush1.bf16.msra.mxu0 %v604
    %674 = vmatprep.subr.bf16.mxu0 0
    %675 = vmatpush1.bf16.msra.mxu0 %v605
    %676 = vmatprep.subr.bf16.mxu0 0
    %677 = vmatpush1.bf16.msra.mxu0 %v606
    %678 = vmatprep.subr.bf16.mxu0 0
    %679 = vmatpush1.bf16.msra.mxu0 %v607
    %680 = vmatprep.subr.bf16.mxu0 0
    %681 = vmatpush1.bf16.msra.mxu0 %v608
    %682 = vmatprep.subr.bf16.mxu0 0
    %683 = vmatpush1.bf16.msra.mxu0 %v609
    %684 = vmatprep.subr.bf16.mxu0 0
    %685 = vmatpush1.bf16.msra.mxu0 %v610
    %686 = vmatprep.subr.bf16.mxu0 0
    %687 = vmatpush1.bf16.msra.mxu0 %v611
    %688 = vmatprep.subr.bf16.mxu0 0
    %689 = vmatpush1.bf16.msra.mxu0 %v612
    %690 = vmatprep.subr.bf16.mxu0 0
    %691 = vmatpush1.bf16.msra.mxu0 %v613
    %692 = vmatprep.subr.bf16.mxu0 0
    %693 = vmatpush1.bf16.msra.mxu0 %v614
    %694 = vmatprep.subr.bf16.mxu0 0
    %695 = vmatpush1.bf16.msra.mxu0 %v615
    %696 = vmatprep.mubr.bf16.mxu0 %v633
    %697 = vmatmul.mubr.bf16.gmra.mrb[0].mxu0 %v632
    %v698 = vpop.f32.mrb[0].mxu0
    %v699 = vadd.f32 0.0, %v698
    %v700 = vpop.f32.mrb[0].mxu0
    %v701 = vpop.f32.mrb[0].mxu0
    %v702 = vadd.f32 0.0, %v701
    %v703 = vpop.f32.mrb[0].mxu0
    %704 = vmatprep.mubr.bf16.mxu0 %v635
    %705 = vmatmul.mubr.bf16.gmra.mrb[0].mxu0 %v634
    %v706 = vpop.f32.mrb[0].mxu0
    %v707 = vadd.f32 0.0, %v706
    %v708 = vpop.f32.mrb[0].mxu0
    %v709 = vpop.f32.mrb[0].mxu0
    %v710 = vadd.f32 0.0, %v709
    %v711 = vpop.f32.mrb[0].mxu0
    %712 = vmatprep.mubr.bf16.mxu0 %v637
    %713 = vmatmul.mubr.bf16.gmra.mrb[0].mxu0 %v636
    %v714 = vpop.f32.mrb[0].mxu0
    %v715 = vadd.f32 0.0, %v714
    %v716 = vpop.f32.mrb[0].mxu0
    %v717 = vpop.f32.mrb[0].mxu0
    %v718 = vadd.f32 0.0, %v717
    %v719 = vpop.f32.mrb[0].mxu0
    %720 = vmatprep.mubr.bf16.mxu0 %v639
    %721 = vmatmul.mubr.bf16.gmra.mrb[0].mxu0 %v638
    %v722 = vpop.f32.mrb[0].mxu0
    %v723 = vadd.f32 0.0, %v722
    %v724 = vpop.f32.mrb[0].mxu0
    %v725 = vpop.f32.mrb[0].mxu0
    %v726 = vadd.f32 0.0, %v725
    %v727 = vpop.f32.mrb[0].mxu0
    %728 = vmatprep.mubr.bf16.mxu0 %v641
    %729 = vmatmul.mubr.bf16.gmra.mrb[0].mxu0 %v640
    %v730 = vpop.f32.mrb[0].mxu0
    %v731 = vadd.f32 0.0, %v730
    %v732 = vpop.f32.mrb[0].mxu0
    %v733 = vpop.f32.mrb[0].mxu0
    %v734 = vadd.f32 0.0, %v733
    %v735 = vpop.f32.mrb[0].mxu0
    %736 = vmatprep.mubr.bf16.mxu0 %v643
    %737 = vmatmul.mubr.bf16.gmra.mrb[0].mxu0 %v642
    %v738 = vpop.f32.mrb[0].mxu0
    %v739 = vadd.f32 0.0, %v738
    %v740 = vpop.f32.mrb[0].mxu0
    %v741 = vpop.f32.mrb[0].mxu0
    %v742 = vadd.f32 0.0, %v741
    %v743 = vpop.f32.mrb[0].mxu0
    %744 = vmatprep.mubr.bf16.mxu0 %v645
    %745 = vmatmul.mubr.bf16.gmra.mrb[0].mxu0 %v644
    %v746 = vpop.f32.mrb[0].mxu0
    %v747 = vadd.f32 0.0, %v746
    %v748 = vpop.f32.mrb[0].mxu0
    %v749 = vpop.f32.mrb[0].mxu0
    %v750 = vadd.f32 0.0, %v749
    %v751 = vpop.f32.mrb[0].mxu0
    %752 = vmatprep.mubr.bf16.mxu0 %v647
    %753 = vmatmul.mubr.bf16.gmra.mrb[0].mxu0 %v646
    %v754 = vpop.f32.mrb[0].mxu0
    %v755 = vadd.f32 0.0, %v754
    %v756 = vpop.f32.mrb[0].mxu0
    %v757 = vpop.f32.mrb[0].mxu0
    %v758 = vadd.f32 0.0, %v757
    %v759 = vpop.f32.mrb[0].mxu0
    %760 = vmatprep.mubr.bf16.mxu0 %v649
    %761 = vmatmul.mubr.bf16.gmra.mrb[0].mxu0 %v648
    %v762 = vpop.f32.mrb[0].mxu0
    %v763 = vadd.f32 0.0, %v762
    %v764 = vpop.f32.mrb[0].mxu0
    %v765 = vpop.f32.mrb[0].mxu0
    %v766 = vadd.f32 0.0, %v765
    %v767 = vpop.f32.mrb[0].mxu0
    %768 = vmatprep.mubr.bf16.mxu0 %v651
    %769 = vmatmul.mubr.bf16.gmra.mrb[0].mxu0 %v650
    %v770 = vpop.f32.mrb[0].mxu0
    %v771 = vadd.f32 0.0, %v770
    %v772 = vpop.f32.mrb[0].mxu0
    %v773 = vpop.f32.mrb[0].mxu0
    %v774 = vadd.f32 0.0, %v773
    %v775 = vpop.f32.mrb[0].mxu0
    %776 = vmatprep.mubr.bf16.mxu0 %v653
    %777 = vmatmul.mubr.bf16.gmra.mrb[0].mxu0 %v652
    %v778 = vpop.f32.mrb[0].mxu0
    %v779 = vadd.f32 0.0, %v778
    %v780 = vpop.f32.mrb[0].mxu0
    %v781 = vpop.f32.mrb[0].mxu0
    %v782 = vadd.f32 0.0, %v781
    %v783 = vpop.f32.mrb[0].mxu0
    %784 = vmatprep.mubr.bf16.mxu0 %v655
    %785 = vmatmul.mubr.bf16.gmra.mrb[0].mxu0 %v654
    %v786 = vpop.f32.mrb[0].mxu0
    %v787 = vadd.f32 0.0, %v786
    %v788 = vpop.f32.mrb[0].mxu0
    %v789 = vpop.f32.mrb[0].mxu0
    %v790 = vadd.f32 0.0, %v789
    %v791 = vpop.f32.mrb[0].mxu0
    %792 = vmatprep.mubr.bf16.mxu0 %v657
    %793 = vmatmul.mubr.bf16.gmra.mrb[0].mxu0 %v656
    %v794 = vpop.f32.mrb[0].mxu0
    %v795 = vadd.f32 0.0, %v794
    %v796 = vpop.f32.mrb[0].mxu0
    %v797 = vpop.f32.mrb[0].mxu0
    %v798 = vadd.f32 0.0, %v797
    %v799 = vpop.f32.mrb[0].mxu0
    %800 = vmatprep.mubr.bf16.mxu0 %v659
    %801 = vmatmul.mubr.bf16.gmra.mrb[0].mxu0 %v658
    %v802 = vpop.f32.mrb[0].mxu0
    %v803 = vadd.f32 0.0, %v802
    %v804 = vpop.f32.mrb[0].mxu0
    %v805 = vpop.f32.mrb[0].mxu0
    %v806 = vadd.f32 0.0, %v805
    %v807 = vpop.f32.mrb[0].mxu0
    %808 = vmatprep.mubr.bf16.mxu0 %v661
    %809 = vmatmul.mubr.bf16.gmra.mrb[0].mxu0 %v660
    %v810 = vpop.f32.mrb[0].mxu0
    %v811 = vadd.f32 0.0, %v810
    %v812 = vpop.f32.mrb[0].mxu0
    %v813 = vpop.f32.mrb[0].mxu0
    %v814 = vadd.f32 0.0, %v813
    %v815 = vpop.f32.mrb[0].mxu0
    %816 = vmatprep.mubr.bf16.mxu0 %v663
    %817 = vmatmul.mubr.bf16.gmra.mrb[0].mxu0 %v662
    %v818 = vpop.f32.mrb[0].mxu0
    %v819 = vadd.f32 0.0, %v818
    %v820 = vpop.f32.mrb[0].mxu0
    %v821 = vpop.f32.mrb[0].mxu0
    %v822 = vadd.f32 0.0, %v821
    %v823 = vpop.f32.mrb[0].mxu0
    %824 = vdwg.mxu0
    %v825 = vmul.f32 %v699, %v411
    %v826 = vmul.f32 %v702, %v416
    %v827 = vmul.f32 %v707, %v421
    %v828 = vmul.f32 %v710, %v426
    %v829 = vmul.f32 %v715, %v431
    %v830 = vmul.f32 %v718, %v436
    %v831 = vmul.f32 %v723, %v441
    %v832 = vmul.f32 %v726, %v446
    %v833 = vmul.f32 %v731, %v451
    %v834 = vmul.f32 %v734, %v456
    %v835 = vmul.f32 %v739, %v461
    %v836 = vmul.f32 %v742, %v466
    %v837 = vmul.f32 %v747, %v471
    %v838 = vmul.f32 %v750, %v476
    %v839 = vmul.f32 %v755, %v481
    %v840 = vmul.f32 %v758, %v486
    %v841 = vmul.f32 %v763, %v491
    %v842 = vmul.f32 %v766, %v496
    %v843 = vmul.f32 %v771, %v501
    %v844 = vmul.f32 %v774, %v506
    %v845 = vmul.f32 %v779, %v511
    %v846 = vmul.f32 %v782, %v516
    %v847 = vmul.f32 %v787, %v521
    %v848 = vmul.f32 %v790, %v526
    %v849 = vmul.f32 %v795, %v531
    %v850 = vmul.f32 %v798, %v536
    %v851 = vmul.f32 %v803, %v541
    %v852 = vmul.f32 %v806, %v546
    %v853 = vmul.f32 %v811, %v551
    %v854 = vmul.f32 %v814, %v556
    %v855 = vmul.f32 %v819, %v561
    %v856 = vmul.f32 %v822, %v566
    %v857 = vld [vmem:[%s4] sm:$0x1]
    %v859 = vlaneseq
    %v860 = vshrl.u32 %v859, 7
    %v861 = vsub.s32 0, %v860
    %v862 = vrot.slane %v857, %v861
    %v864 = vadd.f32 %v825, %v862
    %v865 = vadd.f32 %v826, %v862
    %v866 = vadd.f32 %v827, %v862
    %v867 = vadd.f32 %v828, %v862
    %v868 = vadd.f32 %v829, %v862
    %v869 = vadd.f32 %v830, %v862
    %v870 = vadd.f32 %v831, %v862
    %v871 = vadd.f32 %v832, %v862
    %v872 = vadd.f32 %v833, %v862
    %v873 = vadd.f32 %v834, %v862
    %v874 = vadd.f32 %v835, %v862
    %v875 = vadd.f32 %v836, %v862
    %v876 = vadd.f32 %v837, %v862
    %v877 = vadd.f32 %v838, %v862
    %v878 = vadd.f32 %v839, %v862
    %v879 = vadd.f32 %v840, %v862
    %v880 = vadd.f32 %v841, %v862
    %v881 = vadd.f32 %v842, %v862
    %v882 = vadd.f32 %v843, %v862
    %v883 = vadd.f32 %v844, %v862
    %v884 = vadd.f32 %v845, %v862
    %v885 = vadd.f32 %v846, %v862
    %v886 = vadd.f32 %v847, %v862
    %v887 = vadd.f32 %v848, %v862
    %v888 = vadd.f32 %v849, %v862
    %v889 = vadd.f32 %v850, %v862
    %v890 = vadd.f32 %v851, %v862
    %v891 = vadd.f32 %v852, %v862
    %v892 = vadd.f32 %v853, %v862
    %v893 = vadd.f32 %v854, %v862
    %v894 = vadd.f32 %v855, %v862
    %v895 = vadd.f32 %v856, %v862
    %896 = vst [vmem:[#allocation2] sm:$0xff] %v864
    %897 = vst [vmem:[#allocation2 + $0x8] sm:$0xff] %v865
    %898 = vst [vmem:[#allocation2 + $0x10] sm:$0xff] %v866
    %899 = vst [vmem:[#allocation2 + $0x18] sm:$0xff] %v867
    %900 = vst [vmem:[#allocation2 + $0x20] sm:$0xff] %v868
    %901 = vst [vmem:[#allocation2 + $0x28] sm:$0xff] %v869
    %902 = vst [vmem:[#allocation2 + $0x30] sm:$0xff] %v870
    %903 = vst [vmem:[#allocation2 + $0x38] sm:$0xff] %v871
    %904 = vst [vmem:[#allocation2 + $0x40] sm:$0xff] %v872
    %905 = vst [vmem:[#allocation2 + $0x48] sm:$0xff] %v873
    %906 = vst [vmem:[#allocation2 + $0x50] sm:$0xff] %v874
    %907 = vst [vmem:[#allocation2 + $0x58] sm:$0xff] %v875
    %908 = vst [vmem:[#allocation2 + $0x60] sm:$0xff] %v876
    %909 = vst [vmem:[#allocation2 + $0x68] sm:$0xff] %v877
    %910 = vst [vmem:[#allocation2 + $0x70] sm:$0xff] %v878
    %911 = vst [vmem:[#allocation2 + $0x78] sm:$0xff] %v879
    %912 = vst [vmem:[#allocation2 + $0x80] sm:$0xff] %v880
    %913 = vst [vmem:[#allocation2 + $0x88] sm:$0xff] %v881
    %914 = vst [vmem:[#allocation2 + $0x90] sm:$0xff] %v882
    %915 = vst [vmem:[#allocation2 + $0x98] sm:$0xff] %v883
    %916 = vst [vmem:[#allocation2 + $0xa0] sm:$0xff] %v884
    %917 = vst [vmem:[#allocation2 + $0xa8] sm:$0xff] %v885
    %918 = vst [vmem:[#allocation2 + $0xb0] sm:$0xff] %v886
    %919 = vst [vmem:[#allocation2 + $0xb8] sm:$0xff] %v887
    %920 = vst [vmem:[#allocation2 + $0xc0] sm:$0xff] %v888
    %921 = vst [vmem:[#allocation2 + $0xc8] sm:$0xff] %v889
    %922 = vst [vmem:[#allocation2 + $0xd0] sm:$0xff] %v890
    %923 = vst [vmem:[#allocation2 + $0xd8] sm:$0xff] %v891
    %924 = vst [vmem:[#allocation2 + $0xe0] sm:$0xff] %v892
    %925 = vst [vmem:[#allocation2 + $0xe8] sm:$0xff] %v893
    %926 = vst [vmem:[#allocation2 + $0xf0] sm:$0xff] %v894
    %927 = vst [vmem:[#allocation2 + $0xf8] sm:$0xff] %v895
    // Predicated region
    $region22: #{tpu_custom_call.1} parent=1 // pred_check
      _
    $region23: #{tpu_custom_call.1} parent=1 // pred_check_branch
      %929 = sbr.rel (0) target = $region25
    $region24: #{tpu_custom_call.1} parent=1 // pred_region
      %s931 = ssub.s32 4096, 4096
      %932 = vsyncadd [#allocation3], %s931
      %s933 = sshll.u32 [#allocation2], 4
      %s934 = int_to_ptr.vmem [resolvable:$true] %s933
      %939 = dma.vmem_to_hbm [thread:$0]  %s934, 4096, %s5, [#allocation3], 128, 128, 8
    $region25: #{tpu_custom_call.1} parent=1 // pred_fallthru
      _
    // Predicated region
    $region26: #{tpu_custom_call.1} parent=1 // pred_check
      _
    $region27: #{tpu_custom_call.1} parent=1 // pred_check_branch
      %941 = sbr.rel (0) target = $region29
    $region28: #{tpu_custom_call.1} parent=1 // pred_region
      %942 = dma.done [#allocation3], 4096
    $region29: #{tpu_custom_call.1} parent=1 // pred_fallthru
      _
    %943 = vsyncpa [#allocation3], 1

</llo_original>
